<compile_context>
chip_gen: v6e
topology: v6e:2x2x1
jax: 0.10.0
libtpu: 0.0.40
codegen_flags: <defaults>
</compile_context>

<pallas_src>
import jax
import jax.numpy as jnp
from jax.experimental import pallas as pl
from jax.experimental.pallas import tpu as pltpu


def _round_up(x, m):
    return ((x + m - 1) // m) * m


def fuse_code_predictor_params(w_tex, b_tex, w_shape, b_shape):
    """One-time parameter fusion (do this at init, not per call).

    w_*: (nz_feat, out_dim), b_*: (1, out_dim)  ->  (nz_feat, D), (1, D)
    with D = tex_dim + shape_dim (== 128 for the default module config,
    exactly one lane-dense vreg width).
    """
    w_fused = jnp.concatenate([w_tex, w_shape], axis=1)
    b_fused = jnp.concatenate([b_tex, b_shape], axis=1)
    return w_fused, b_fused


def _code_predictor_tex_kernel(feat_ref, w_ref, b_ref, tex_ref, shape_ref):
    # One fused matmul on the MXU (f32 accumulation), bias add on the VPU,
    # then split directly into the two output refs (the lane realignment for the
    # second half goes through the XLU slot, which is idle here).
    acc = jnp.dot(feat_ref[...], w_ref[...], preferred_element_type=jnp.float32)
    acc = acc + b_ref[...]
    td = tex_ref.shape[-1]
    tex_ref[...] = acc[:, :td].astype(tex_ref.dtype)
    shape_ref[...] = acc[:, td:].astype(shape_ref.dtype)


def _pick_tile(B, small_batch_threshold):
    # Big tiles so DMA time per step well exceeds the ~0.35us fixed step cost,
    # but for large B keep >= 2 grid steps so v7x can shard across its 2 TCs.
    # 32-row alignment keeps the block legal for f32/bf16/int8 sublane packing.
    tile_b = min(2048, _round_up(pl.cdiv(B, 2), 32))
    return max(tile_b, 32)


def code_predictor_tex_fused(feat, w_fused, b_fused, tex_dim,
                             small_batch_threshold=512):
    """feat: (B, nz_feat); w_fused: (nz_feat, D); b_fused: (1, D).

    Returns (tex_code (B, tex_dim), shape_code (B, D - tex_dim)).
    """
    B, nz = feat.shape
    out_dim = w_fused.shape[1]
    shape_dim = out_dim - tex_dim

    # Small-batch fast path: a single tiny GEMM; XLA's fused path beats the
    # pallas_call launch + single-step pipeline overhead.
    if B < small_batch_threshold:
        out = feat @ w_fused + b_fused
        return out[:, :tex_dim], out[:, tex_dim:]

    tile_b = _pick_tile(B, small_batch_threshold)
    grid = (pl.cdiv(B, tile_b),)   # ragged final block handled by Pallas masking

    itemsize = jnp.dtype(feat.dtype).itemsize
    cost = pl.CostEstimate(
        flops=2 * B * nz * out_dim,
        transcendentals=0,
        bytes_accessed=(B * nz + nz * out_dim + out_dim + B * out_dim) * itemsize,
    )

    tex_code, shape_code = pl.pallas_call(
        _code_predictor_tex_kernel,
        out_shape=(
            jax.ShapeDtypeStruct((B, tex_dim), feat.dtype),
            jax.ShapeDtypeStruct((B, shape_dim), feat.dtype),
        ),
        grid=grid,
        in_specs=[
            pl.BlockSpec((tile_b, nz), lambda i: (i, 0)),     # feat: tiled over rows
            pl.BlockSpec((nz, out_dim), lambda i: (0, 0)),    # fused W: VMEM-resident
            pl.BlockSpec((1, out_dim), lambda i: (0, 0)),     # fused bias: VMEM-resident
        ],
        out_specs=[
            pl.BlockSpec((tile_b, tex_dim), lambda i: (i, 0)),
            pl.BlockSpec((tile_b, shape_dim), lambda i: (i, 0)),
        ],
        compiler_params=pltpu.CompilerParams(
            dimension_semantics=("parallel",),  # lets v7x shard row tiles across its 2 TCs
        ),
        cost_estimate=cost,
    )(feat, w_fused, b_fused)

    return tex_code, shape_code


def code_predictor_tex(feat, w_tex, b_tex, w_shape, b_shape,
                       small_batch_threshold=512):
    """Convenience wrapper matching the unfused parameter layout.

    Prefer calling fuse_code_predictor_params once at init and then
    code_predictor_tex_fused per step.
    """
    w_fused, b_fused = fuse_code_predictor_params(w_tex, b_tex, w_shape, b_shape)
    return code_predictor_tex_fused(feat, w_fused, b_fused, w_tex.shape[1],
                                    small_batch_threshold=small_batch_threshold)


if __name__ == "__main__":
    # Small shapes consistent with the module's forward: feat is (batch, nz_feat).
    batch = 2
    nz_feat = 32
    tex_code_dim = 64
    shape_code_dim = 64

    key = jax.random.PRNGKey(0)
    k_feat, k_wt, k_bt, k_ws, k_bs = jax.random.split(key, 5)

    feat = jax.random.normal(k_feat, (batch, nz_feat), dtype=jnp.float32)

    # PyTorch Linear default init: U(-1/sqrt(in), 1/sqrt(in)).
    bound = 1.0 / (nz_feat ** 0.5)
    w_tex = jax.random.uniform(k_wt, (nz_feat, tex_code_dim),
                               minval=-bound, maxval=bound, dtype=jnp.float32)
    b_tex = jax.random.uniform(k_bt, (1, tex_code_dim),
                               minval=-bound, maxval=bound, dtype=jnp.float32)
    w_shape = jax.random.uniform(k_ws, (nz_feat, shape_code_dim),
                                 minval=-bound, maxval=bound, dtype=jnp.float32)
    b_shape = jax.random.uniform(k_bs, (1, shape_code_dim),
                                 minval=-bound, maxval=bound, dtype=jnp.float32)

    # One-time parameter fusion (parameter-setup time).
    w_fused, b_fused = fuse_code_predictor_params(w_tex, b_tex, w_shape, b_shape)

    # 1) Default path at batch=2 (small-batch fast path).
    tex_code, shape_code = code_predictor_tex_fused(feat, w_fused, b_fused, tex_code_dim)
    jax.block_until_ready((tex_code, shape_code))

    tex_ref = feat @ w_tex + b_tex
    shape_ref = feat @ w_shape + b_shape
    assert tex_code.shape == (batch, tex_code_dim)
    assert shape_code.shape == (batch, shape_code_dim)
    assert jnp.allclose(tex_code, tex_ref, atol=1e-5), "tex_code mismatch (fast path)"
    assert jnp.allclose(shape_code, shape_ref, atol=1e-5), "shape_code mismatch (fast path)"

    # 2) Force the Pallas path at batch=2 (ragged, single-step grid).
    tex_p, shape_p = code_predictor_tex_fused(feat, w_fused, b_fused, tex_code_dim,
                                              small_batch_threshold=0)
    jax.block_until_ready((tex_p, shape_p))
    assert jnp.allclose(tex_p, tex_ref, atol=1e-5), "tex_code mismatch (pallas small)"
    assert jnp.allclose(shape_p, shape_ref, atol=1e-5), "shape_code mismatch (pallas small)"

    # 3) Larger batch: multi-tile pipelined Pallas path with a ragged last block
    #    (no padding / slicing round trips).
    big_b = 2048 + 37
    big_feat = jax.random.normal(key, (big_b, nz_feat), dtype=jnp.float32)
    big_tex, big_shape = code_predictor_tex_fused(big_feat, w_fused, b_fused, tex_code_dim)
    jax.block_until_ready((big_tex, big_shape))
    assert big_tex.shape == (big_b, tex_code_dim)
    assert big_shape.shape == (big_b, shape_code_dim)
    assert jnp.allclose(big_tex, big_feat @ w_tex + b_tex, atol=1e-4), "big tex mismatch"
    assert jnp.allclose(big_shape, big_feat @ w_shape + b_shape, atol=1e-4), "big shape mismatch"

    print("KERNEL_OK")
</pallas_src>

<mosaic_0001>
module attributes {stable_mosaic.version = 11 : i64} {
  func.func @_code_predictor_tex_kernel(%arg0: i32, %arg1: memref<32x32xf32, #tpu.memory_space<vmem>>, %arg2: memref<32x128xf32, #tpu.memory_space<vmem>>, %arg3: memref<1x128xf32, #tpu.memory_space<vmem>>, %arg4: memref<32x64xf32, #tpu.memory_space<vmem>>, %arg5: memref<32x64xf32, #tpu.memory_space<vmem>>) attributes {dimension_semantics = [#tpu.dimension_semantics<parallel>], iteration_bounds = array<i64: 1>, scalar_prefetch = 0 : i64, scratch_operands = 0 : i64, tpu.core_type = #tpu.core_type<tc>, window_params = [{transform_indices = @transform_0, window_bounds = array<i64: 32, 32>}, {pipeline_mode = #tpu.pipeline_mode<synchronous>, transform_indices = @transform_1, window_bounds = array<i64: 32, 128>}, {pipeline_mode = #tpu.pipeline_mode<synchronous>, transform_indices = @transform_2, window_bounds = array<i64: 1, 128>}, {transform_indices = @transform_3, window_bounds = array<i64: 32, 64>}, {transform_indices = @transform_4, window_bounds = array<i64: 32, 64>}]} {
    %c0 = arith.constant 0 : index
    %c0_0 = arith.constant 0 : index
    %0 = vector.load %arg1[%c0, %c0_0] : memref<32x32xf32, #tpu.memory_space<vmem>>, vector<32x32xf32>
    %c0_1 = arith.constant 0 : index
    %c0_2 = arith.constant 0 : index
    %1 = vector.load %arg2[%c0_1, %c0_2] : memref<32x128xf32, #tpu.memory_space<vmem>>, vector<32x128xf32>
    %cst = arith.constant dense<0.000000e+00> : vector<32x128xf32>
    %2 = tpu.matmul %0, %1, %cst {dimension_numbers = #tpu.dot_dimension_numbers<[1], [0], [0], [1], [0, 0, 1, 1], [], []>} : vector<32x32xf32>, vector<32x128xf32>, vector<32x128xf32> -> vector<32x128xf32>
    %c0_3 = arith.constant 0 : index
    %c0_4 = arith.constant 0 : index
    %3 = vector.load %arg3[%c0_3, %c0_4] : memref<1x128xf32, #tpu.memory_space<vmem>>, vector<1x128xf32>
    %4 = vector.broadcast %3 : vector<1x128xf32> to vector<32x128xf32>
    %5 = arith.addf %2, %4 : vector<32x128xf32>
    %6 = vector.extract_strided_slice %5 {offsets = [0, 0], sizes = [32, 64], strides = [1, 1]} : vector<32x128xf32> to vector<32x64xf32>
    %c0_5 = arith.constant 0 : index
    %c0_6 = arith.constant 0 : index
    %7 = vector.load %arg4[%c0_5, %c0_6] : memref<32x64xf32, #tpu.memory_space<vmem>>, vector<32x64xf32>
    tpu.vector_store %arg4[%c0_5, %c0_6], %6 {strides = array<i32>} : memref<32x64xf32, #tpu.memory_space<vmem>>, vector<32x64xf32>,
    %8 = vector.extract_strided_slice %5 {offsets = [0, 64], sizes = [32, 64], strides = [1, 1]} : vector<32x128xf32> to vector<32x64xf32>
    %c0_7 = arith.constant 0 : index
    %c0_8 = arith.constant 0 : index
    %9 = vector.load %arg5[%c0_7, %c0_8] : memref<32x64xf32, #tpu.memory_space<vmem>>, vector<32x64xf32>
    tpu.vector_store %arg5[%c0_7, %c0_8], %8 {strides = array<i32>} : memref<32x64xf32, #tpu.memory_space<vmem>>, vector<32x64xf32>,
    return
  }
  func.func @transform_0(%arg0: i32) -> (i32, i32) {
    %c0_i32 = arith.constant 0 : i32
    %c0_i32_0 = arith.constant 0 : i32
    return %arg0, %c0_i32 : i32, i32
  }
  func.func @transform_1(%arg0: i32) -> (i32, i32) {
    %c0_i32 = arith.constant 0 : i32
    %c0_i32_0 = arith.constant 0 : i32
    %c0_i32_1 = arith.constant 0 : i32
    return %c0_i32, %c0_i32_0 : i32, i32
  }
  func.func @transform_2(%arg0: i32) -> (i32, i32) {
    %c0_i32 = arith.constant 0 : i32
    %c0_i32_0 = arith.constant 0 : i32
    %c0_i32_1 = arith.constant 0 : i32
    return %c0_i32, %c0_i32_0 : i32, i32
  }
  func.func @transform_3(%arg0: i32) -> (i32, i32) {
    %c0_i32 = arith.constant 0 : i32
    %c0_i32_0 = arith.constant 0 : i32
    return %arg0, %c0_i32 : i32, i32
  }
  func.func @transform_4(%arg0: i32) -> (i32, i32) {
    %c0_i32 = arith.constant 0 : i32
    %c0_i32_0 = arith.constant 0 : i32
    return %arg0, %c0_i32 : i32, i32
  }
}

</mosaic_0001>

<llo_original>
// kernel: tpu_custom_call.1
$region0: #{tpu_custom_call.1}
  #allocation0 [shape = 'u32[]', space=smem, size = 0x4, offset = 0x4, fixed_abs, tag = 'smem constant byte address 0x4 - core index']
  #allocation1 [shape = 'u32[144,128]{1,0:T(1,128)}', space=vmem, size = 0x12000, scoped, tag = 'internal scratch']
  %s0 = inlined_call_operand.hbm [shape: f32[2,32], index: 0, kind: input, shape index: {}]
  %s1 = inlined_call_operand.hbm [shape: f32[32,128], index: 1, kind: input, shape index: {}]
  %s2 = inlined_call_operand.vmem [shape: f32[1,128], index: 2, kind: input, shape index: {}]
  %s3 = inlined_call_operand.hbm [shape: f32[2,64], index: 3, kind: output, shape index: {0}]
  %s4 = inlined_call_operand.hbm [shape: f32[2,64], index: 4, kind: output, shape index: {1}]
  %5 = xla_tuple %s3, %s4
  %s6 = sld [smem:[#allocation0]]
  $region38: #{tpu_custom_call.1} parent=0
    _
  %s8 = ssub.s32 1, %s6
  %s9 = scalar_select 0, %s8, %s6
  $region1: #{tpu_custom_call.1} parent=0
    #allocation2 [shape = 'u8[16384]{0}', space=vmem, size = 0x4000, scoped, tag = 'input window, operand 0, single buffered']
    #allocation3 [shape = 's32[1]{0}', space=sflag, size = 0x4, scoped, tag = 'scoped memory for tpu_custom_call.1']
    #allocation4 [shape = 's32[1]{0}', space=sflag, size = 0x4, scoped, tag = 'scoped memory for tpu_custom_call.1']
    #allocation5 [shape = 'u8[16384]{0}', space=vmem, size = 0x4000, scoped, tag = 'input window, operand 1, single buffered']
    #allocation6 [shape = 's32[1]{0}', space=sflag, size = 0x4, scoped, tag = 'scoped memory for tpu_custom_call.1']
    #allocation7 [shape = 'u8[16384]{0}', space=vmem, size = 0x4000, scoped, tag = 'output window, operand 0, single buffered']
    #allocation8 [shape = 'u8[16384]{0}', space=vmem, size = 0x4000, scoped, tag = 'output window, operand 1, single buffered']
    #allocation9 [shape = 's32[1]{0}', space=sflag, size = 0x4, scoped, tag = 'scoped memory for tpu_custom_call.1']
    %10 = vsyncpa [#allocation3], 0
    %11 = vsyncpa [#allocation6], 0
    %12 = vsyncpa [#allocation4], 0
    %13 = vsyncpa [#allocation9], 0
    // Predicated region
    $region2: #{tpu_custom_call.1} parent=1 // pred_check
      _
    $region3: #{tpu_custom_call.1} parent=1 // pred_check_branch
      %15 = sbr.rel (0) target = $region5
    $region4: #{tpu_custom_call.1} parent=1 // pred_region
      %s17 = ssub.s32 512, 32
      %18 = vsyncadd [#allocation3], %s17
      %s19 = sshll.u32 [#allocation2], 4
      %s20 = int_to_ptr.vmem [resolvable:$true] %s19
      %25 = dma.hbm_to_vmem [thread:$0]  %s0, 32, %s20, [#allocation3], 32, 32, 2
    $region5: #{tpu_custom_call.1} parent=1 // pred_fallthru
      _
    // Predicated region
    $region6: #{tpu_custom_call.1} parent=1 // pred_check
      _
    $region7: #{tpu_custom_call.1} parent=1 // pred_check_branch
      %27 = sbr.rel (0) target = $region9
    $region8: #{tpu_custom_call.1} parent=1 // pred_region
      %s29 = ssub.s32 512, 512
      %30 = vsyncadd [#allocation6], %s29
      %s31 = sshll.u32 [#allocation5], 4
      %s32 = int_to_ptr.vmem [resolvable:$true] %s31
      %37 = dma.hbm_to_vmem [thread:$0]  %s1, 512, %s32, [#allocation6], 128, 128, 8
    $region9: #{tpu_custom_call.1} parent=1 // pred_fallthru
      _
    // Predicated region
    $region10: #{tpu_custom_call.1} parent=1 // pred_check
      _
    $region11: #{tpu_custom_call.1} parent=1 // pred_check_branch
      %39 = sbr.rel (0) target = $region13
    $region12: #{tpu_custom_call.1} parent=1 // pred_region
      _
    $region13: #{tpu_custom_call.1} parent=1 // pred_fallthru
      _
    // Predicated region
    $region14: #{tpu_custom_call.1} parent=1 // pred_check
      _
    $region15: #{tpu_custom_call.1} parent=1 // pred_check_branch
      %41 = sbr.rel (0) target = $region17
    $region16: #{tpu_custom_call.1} parent=1 // pred_region
      %42 = dma.done [#allocation3], 512
    $region17: #{tpu_custom_call.1} parent=1 // pred_fallthru
      _
    // Predicated region
    $region18: #{tpu_custom_call.1} parent=1 // pred_check
      _
    $region19: #{tpu_custom_call.1} parent=1 // pred_check_branch
      %44 = sbr.rel (0) target = $region21
    $region20: #{tpu_custom_call.1} parent=1 // pred_region
      %45 = dma.done [#allocation6], 512
    $region21: #{tpu_custom_call.1} parent=1 // pred_fallthru
      _
    %v46 = vld [vmem:[#allocation2] sm:$0xff]
    %v47 = vld [vmem:[#allocation2 + $0x8] sm:$0xff]
    %v48 = vld [vmem:[#allocation2 + $0x10] sm:$0xff]
    %v49 = vld [vmem:[#allocation2 + $0x18] sm:$0xff]
    %v50 = vld [vmem:[#allocation5] sm:$0xff]
    %v51 = vld [vmem:[#allocation5 + $0x8] sm:$0xff]
    %v52 = vld [vmem:[#allocation5 + $0x10] sm:$0xff]
    %v53 = vld [vmem:[#allocation5 + $0x18] sm:$0xff]
    %v54 = vld [vmem:[%s2] sm:$0x1]
    %v56 = vlaneseq
    %v57 = vshrl.u32 %v56, 7
    %v58 = vsub.s32 0, %v57
    %v59 = vrot.slane %v54, %v58
    %vm61 = vcmask 261120
    %v63 = vsel %vm61, %v46, 0
    %v66 = vsel %vm61, %v47, 0
    %v69 = vsel %vm61, %v48, 0
    %v72 = vsel %vm61, %v49, 0
    %74 = vmatprep.subr.mxu0 0.0
    %75 = vmatpush1.msra.mxu0 0.0
    %76 = vmatprep.subr.mxu0 0.0
    %77 = vmatpush1.msra.mxu0 0.0
    %78 = vmatprep.subr.mxu0 0.0
    %79 = vmatpush1.msra.mxu0 0.0
    %80 = vmatprep.subr.mxu0 0.0
    %81 = vmatpush1.msra.mxu0 0.0
    %82 = vmatprep.subr.mxu0 0.0
    %83 = vmatpush1.msra.mxu0 0.0
    %84 = vmatprep.subr.mxu0 0.0
    %85 = vmatpush1.msra.mxu0 0.0
    %86 = vmatprep.subr.mxu0 0.0
    %87 = vmatpush1.msra.mxu0 0.0
    %88 = vmatprep.subr.mxu0 0.0
    %89 = vmatpush1.msra.mxu0 0.0
    %90 = vmatprep.subr.mxu0 0.0
    %91 = vmatpush1.msra.mxu0 0.0
    %92 = vmatprep.subr.mxu0 0.0
    %93 = vmatpush1.msra.mxu0 0.0
    %94 = vmatprep.subr.mxu0 0.0
    %95 = vmatpush1.msra.mxu0 0.0
    %96 = vmatprep.subr.mxu0 0.0
    %97 = vmatpush1.msra.mxu0 0.0
    %98 = vmatprep.subr.mxu0 0.0
    %99 = vmatpush1.msra.mxu0 %v53
    %100 = vmatprep.subr.mxu0 0.0
    %101 = vmatpush1.msra.mxu0 %v52
    %102 = vmatprep.subr.mxu0 0.0
    %103 = vmatpush1.msra.mxu0 %v51
    %104 = vmatprep.subr.mxu0 0.0
    %105 = vmatpush1.msra.mxu0 %v50
    %106 = vmatprep.subr.mxu0 0.0
    %107 = vmatpush2.msra.mxu0 0.0
    %108 = vmatprep.subr.mxu0 0.0
    %109 = vmatpush2.msra.mxu0 0.0
    %110 = vmatprep.subr.mxu0 0.0
    %111 = vmatpush2.msra.mxu0 0.0
    %112 = vmatprep.subr.mxu0 0.0
    %113 = vmatpush2.msra.mxu0 0.0
    %114 = vmatprep.subr.mxu0 0.0
    %115 = vmatpush2.msra.mxu0 0.0
    %116 = vmatprep.subr.mxu0 0.0
    %117 = vmatpush2.msra.mxu0 0.0
    %118 = vmatprep.subr.mxu0 0.0
    %119 = vmatpush2.msra.mxu0 0.0
    %120 = vmatprep.subr.mxu0 0.0
    %121 = vmatpush2.msra.mxu0 0.0
    %122 = vmatprep.subr.mxu0 0.0
    %123 = vmatpush2.msra.mxu0 0.0
    %124 = vmatprep.subr.mxu0 0.0
    %125 = vmatpush2.msra.mxu0 0.0
    %126 = vmatprep.subr.mxu0 0.0
    %127 = vmatpush2.msra.mxu0 0.0
    %128 = vmatprep.subr.mxu0 0.0
    %129 = vmatpush2.msra.mxu0 0.0
    %130 = vmatprep.subr.mxu0 0.0
    %131 = vmatpush2.msra.mxu0 0.0
    %132 = vmatprep.subr.mxu0 0.0
    %133 = vmatpush2.msra.mxu0 0.0
    %134 = vmatprep.subr.mxu0 0.0
    %135 = vmatpush2.msra.mxu0 0.0
    %136 = vmatprep.subr.mxu0 0.0
    %137 = vmatpush2.msra.mxu0 0.0
    %138 = vmatprep.mubr.f32.mxu0 0.0
    %139 = vmatmul.mubr.f32.gmra.mxu0 %v63
    %v140 = vpop.f32.mrf.mxu0
    %v141 = vadd.f32 %v59, %v140
    %v142 = vpop.f32.mrf.mxu0
    %143 = vmatprep.mubr.f32.mxu0 0.0
    %144 = vmatmul.mubr.f32.gmra.mxu0 %v66
    %v145 = vpop.f32.mrf.mxu0
    %v146 = vadd.f32 %v59, %v145
    %v147 = vpop.f32.mrf.mxu0
    %148 = vmatprep.mubr.f32.mxu0 0.0
    %149 = vmatmul.mubr.f32.gmra.mxu0 %v69
    %v150 = vpop.f32.mrf.mxu0
    %v151 = vadd.f32 %v59, %v150
    %v152 = vpop.f32.mrf.mxu0
    %153 = vmatprep.mubr.f32.mxu0 0.0
    %154 = vmatmul.mubr.f32.gmra.mxu0 %v72
    %v155 = vpop.f32.mrf.mxu0
    %v156 = vadd.f32 %v59, %v155
    %v157 = vpop.f32.mrf.mxu0
    %158 = vdwg.mxu0
    %vm159 = vcmask 523264
    %160 = vst.msk [vmem:[#allocation7] sm:$0xff] %vm159, %v141
    %161 = vst.msk [vmem:[#allocation7 + $0x8] sm:$0xff] %vm159, %v146
    %162 = vst.msk [vmem:[#allocation7 + $0x10] sm:$0xff] %vm159, %v151
    %163 = vst.msk [vmem:[#allocation7 + $0x18] sm:$0xff] %vm159, %v156
    %168 = vrot.lane.b32.xlu0 %v141, 64
    %v169 = vpop.permute.xlu0 %168
    %170 = vrot.lane.b32.xlu0 %v146, 64
    %v171 = vpop.permute.xlu0 %170
    %172 = vrot.lane.b32.xlu0 %v151, 64
    %v173 = vpop.permute.xlu0 %172
    %174 = vrot.lane.b32.xlu0 %v156, 64
    %v175 = vpop.permute.xlu0 %174
    %180 = vst.msk [vmem:[#allocation8] sm:$0xff] %vm159, %v169
    %181 = vst.msk [vmem:[#allocation8 + $0x8] sm:$0xff] %vm159, %v171
    %182 = vst.msk [vmem:[#allocation8 + $0x10] sm:$0xff] %vm159, %v173
    %183 = vst.msk [vmem:[#allocation8 + $0x18] sm:$0xff] %vm159, %v175
    // Predicated region
    $region22: #{tpu_custom_call.1} parent=1 // pred_check
      _
    $region23: #{tpu_custom_call.1} parent=1 // pred_check_branch
      %185 = sbr.rel (0) target = $region25
    $region24: #{tpu_custom_call.1} parent=1 // pred_region
      %s187 = ssub.s32 512, 32
      %188 = vsyncadd [#allocation4], %s187
      %s189 = sshll.u32 [#allocation7], 4
      %s190 = int_to_ptr.vmem [resolvable:$true] %s189
      %195 = dma.vmem_to_hbm [thread:$0]  %s190, 32, %s3, [#allocation4], 32, 32, 2
    $region25: #{tpu_custom_call.1} parent=1 // pred_fallthru
      _
    // Predicated region
    $region26: #{tpu_custom_call.1} parent=1 // pred_check
      _
    $region27: #{tpu_custom_call.1} parent=1 // pred_check_branch
      %197 = sbr.rel (0) target = $region29
    $region28: #{tpu_custom_call.1} parent=1 // pred_region
      %s199 = ssub.s32 512, 32
      %200 = vsyncadd [#allocation9], %s199
      %s201 = sshll.u32 [#allocation8], 4
      %s202 = int_to_ptr.vmem [resolvable:$true] %s201
      %207 = dma.vmem_to_hbm [thread:$0]  %s202, 32, %s4, [#allocation9], 32, 32, 2
    $region29: #{tpu_custom_call.1} parent=1 // pred_fallthru
      _
    // Predicated region
    $region30: #{tpu_custom_call.1} parent=1 // pred_check
      _
    $region31: #{tpu_custom_call.1} parent=1 // pred_check_branch
      %209 = sbr.rel (0) target = $region33
    $region32: #{tpu_custom_call.1} parent=1 // pred_region
      %210 = dma.done [#allocation4], 512
    $region33: #{tpu_custom_call.1} parent=1 // pred_fallthru
      _
    // Predicated region
    $region34: #{tpu_custom_call.1} parent=1 // pred_check
      _
    $region35: #{tpu_custom_call.1} parent=1 // pred_check_branch
      %212 = sbr.rel (0) target = $region37
    $region36: #{tpu_custom_call.1} parent=1 // pred_region
      %213 = dma.done [#allocation9], 512
    $region37: #{tpu_custom_call.1} parent=1 // pred_fallthru
      _
    %214 = vsyncpa [#allocation3], 1
    %215 = vsyncpa [#allocation6], 1
    %216 = vsyncpa [#allocation4], 1
    %217 = vsyncpa [#allocation9], 1

</llo_original>
